<compile_context>
chip_gen: v5e
topology: v5e:2x2
jax: 0.10.0
libtpu: 0.0.40
codegen_flags: <defaults>
</compile_context>

<pallas_src>
import jax
import jax.numpy as jnp
from jax.experimental import pallas as pl
from jax.experimental.pallas import tpu as pltpu

_MIB = 1024 * 1024


def _round_up(x, m):
    return ((x + m - 1) // m) * m


def _vmem_capacity_bytes():
    try:
        return int(pltpu.get_tpu_info().vmem_capacity_bytes)
    except Exception:
        return 64 * _MIB  # conservative default: v7x


# --------------------------------------------------------------------------
# Kernels
# --------------------------------------------------------------------------
def _resident_kernel(x_ref, w_ref, b_ref, o_ref):
    """One (tm, N) output row band; W/bias are VMEM-resident, K reduced in-dot."""
    o_ref[...] = (
        jnp.dot(x_ref[...], w_ref[...], preferred_element_type=jnp.float32)
        + b_ref[...]
    ).astype(o_ref.dtype)


def _streamed_kernel(x_ref, w_ref, b_ref, o_ref, acc_ref):
    """Fallback: tiled (M, N, K) matmul, K innermost, f32 accumulator."""
    k = pl.program_id(2)
    part = jnp.dot(x_ref[...], w_ref[...], preferred_element_type=jnp.float32)

    @pl.when(k == 0)
    def _():
        acc_ref[...] = part          # first K tile: assign (no zero-init+add)

    @pl.when(k != 0)
    def _():
        acc_ref[...] = acc_ref[...] + part

    @pl.when(k == pl.num_programs(2) - 1)
    def _():
        o_ref[...] = (acc_ref[...] + b_ref[...]).astype(o_ref.dtype)


# --------------------------------------------------------------------------
# Wrappers
# --------------------------------------------------------------------------
def _linear_resident(x2d, w, b2, out_dtype, tm, vmem_cap):
    M, K = x2d.shape
    _, N = w.shape
    cb = x2d.dtype.itemsize
    ob = out_dtype.itemsize

    # Pick the M tile: large (amortize per-step overhead, esp. v5e), but split
    # into >=2 tiles when the problem is big enough so both v7x TCs get work.
    tm = 512 if tm is None else _round_up(max(tm, 8), 8)
    if M <= tm:
        if M >= 256:
            tm = _round_up(-(-M // 2), 8)      # ceil(M/2), 8-aligned
        elif M < 8:
            tm = M                              # block dim == full dim
        else:
            tm = _round_up(M, 8)

    def need(t):
        return (w.size * cb + b2.size * 4       # resident W + bias
                + 2 * t * K * cb                # double-buffered x tiles
                + 2 * t * N * ob)               # double-buffered out tiles

    budget = int(vmem_cap * 0.85)
    while tm > 8 and need(tm) > budget:
        tm = max(8, _round_up(tm // 2, 8))

    grid_m = pl.cdiv(M, tm)
    vmem_limit = int(min(vmem_cap - 2 * _MIB,
                         max(32 * _MIB, need(tm) + 8 * _MIB)))

    return pl.pallas_call(
        _resident_kernel,
        out_shape=jax.ShapeDtypeStruct((M, N), out_dtype),
        grid_spec=pltpu.PrefetchScalarGridSpec(
            num_scalar_prefetch=0,
            grid=(grid_m,),
            in_specs=[
                pl.BlockSpec((tm, K), lambda i: (i, 0)),   # x row band
                pl.BlockSpec((K, N), lambda i: (0, 0)),    # W: VMEM-resident
                pl.BlockSpec((1, N), lambda i: (0, 0)),    # bias: VMEM-resident
            ],
            out_specs=pl.BlockSpec((tm, N), lambda i: (i, 0)),
        ),
        compiler_params=pltpu.CompilerParams(
            dimension_semantics=("parallel",),
            vmem_limit_bytes=vmem_limit,
        ),
    )(x2d, w, b2)


def _pick_div_tile(dim_p, cap=512):
    """Largest 128-multiple tile <= cap dividing dim_p (itself a 128-multiple).
    Prefers 256-multiples (full MXU width on v6e/v7x)."""
    if dim_p <= cap:
        return dim_p
    for t in (512, 256, 384, 128):
        if t <= cap and dim_p % t == 0:
            return t
    return 128


def _linear_streamed(x2d, w, b2, out_dtype, tm, vmem_cap):
    """Fallback when W does not fit VMEM.  Pads only K/N to tile multiples
    (minimal 128-aligned K padding; M stays ragged, never padded)."""
    M, K = x2d.shape
    _, N = w.shape
    cb = x2d.dtype.itemsize
    ob = out_dtype.itemsize

    Kp = _round_up(K, 128)
    Np = _round_up(N, 128)
    tk = _pick_div_tile(Kp, 512)
    tn = _pick_div_tile(Np, 512)
    tm = 512 if tm is None else _round_up(max(tm, 8), 8)
    tm = min(tm, _round_up(M, 8))

    def need(t):
        return (2 * t * tk * cb + 2 * tk * tn * cb + 2 * tn * 4
                + 2 * t * tn * ob + t * tn * 4)

    budget = int(vmem_cap * 0.8)
    while tm > 8 and need(tm) > budget:
        tm = max(8, _round_up(tm // 2, 8))

    if Kp != K:
        x2d = jnp.pad(x2d, ((0, 0), (0, Kp - K)))
    if (Kp, Np) != (K, N):
        w = jnp.pad(w, ((0, Kp - K), (0, Np - N)))
    if Np != N:
        b2 = jnp.pad(b2, ((0, 0), (0, Np - N)))

    grid = (pl.cdiv(M, tm), Np // tn, Kp // tk)
    vmem_limit = int(min(vmem_cap - 2 * _MIB,
                         max(32 * _MIB, need(tm) + 8 * _MIB)))

    y = pl.pallas_call(
        _streamed_kernel,
        out_shape=jax.ShapeDtypeStruct((M, Np), out_dtype),
        grid_spec=pltpu.PrefetchScalarGridSpec(
            num_scalar_prefetch=0,
            grid=grid,
            in_specs=[
                pl.BlockSpec((tm, tk), lambda i, j, k: (i, k)),  # x tile
                pl.BlockSpec((tk, tn), lambda i, j, k: (k, j)),  # W tile
                pl.BlockSpec((1, tn), lambda i, j, k: (0, j)),   # bias tile
            ],
            out_specs=pl.BlockSpec((tm, tn), lambda i, j, k: (i, j)),
            scratch_shapes=[pltpu.VMEM((tm, tn), jnp.float32)],
        ),
        compiler_params=pltpu.CompilerParams(
            dimension_semantics=("parallel", "parallel", "arbitrary"),
            vmem_limit_bytes=vmem_limit,
        ),
    )(x2d, w, b2)
    return y[:, :N] if Np != N else y


def linear_pallas(x2d, w, b, *, compute_dtype=jnp.bfloat16, tm=None,
                  max_resident_bytes=None):
    """y = x2d @ w + b.  x2d:(M,K), w:(K,N), b:(N,).

    compute_dtype: dtype fed to the MXU (bf16 default; None keeps the input
    dtype).  Accumulation is always f32; the output keeps x2d's dtype.
    Note: even the "f32" path is not bit-exact f32 — TPU MXUs have no native
    f32 MACs, so f32 matmuls lower to multi-pass bf16 schemes.
    """
    M, K = x2d.shape
    K2, N = w.shape
    assert K == K2, (K, K2)
    out_dtype = x2d.dtype
    b2 = jnp.asarray(b).reshape(1, N).astype(jnp.float32)

    if compute_dtype is not None and x2d.dtype != jnp.dtype(compute_dtype):
        x2d = x2d.astype(compute_dtype)
        w = w.astype(compute_dtype)

    vmem_cap = _vmem_capacity_bytes()
    cb = x2d.dtype.itemsize
    # Resident-W budget: ~40 MiB on v7x (64 MiB VMEM), ~77 MiB on v5e/v6e,
    # leaving room for double-buffered x/out tiles and pipeline slack.
    resident_budget = (int(vmem_cap * 0.6) if max_resident_bytes is None
                       else max_resident_bytes)
    if K * N * cb + N * 4 <= resident_budget:
        return _linear_resident(x2d, w, b2, out_dtype, tm, vmem_cap)
    return _linear_streamed(x2d, w, b2, out_dtype, tm, vmem_cap)


def time_distributed_linear(x, w, b, batch_first=True, **kw):
    """Mirror TimeDistributed.forward with an inner nn.Linear (w:(in,out), b:(out,))."""
    if x.ndim <= 2:
        return linear_pallas(x, w, b, **kw)
    F = x.shape[-1]
    x2d = x.reshape(-1, F)
    y = linear_pallas(x2d, w, b, **kw)
    out = y.shape[-1]
    if batch_first:
        return y.reshape(x.shape[0], -1, out)
    return y.reshape(-1, x.shape[1], out)


# --------------------------------------------------------------------------
# Self-test
# --------------------------------------------------------------------------
if __name__ == "__main__":
    key = jax.random.PRNGKey(0)

    # --- Check 1: small (B, T, F) shapes, f32-input path (resident W). ---
    B, T, F, O = 2, 8, 32, 64
    kx, kw, kb = jax.random.split(key, 3)
    x = jax.random.normal(kx, (B, T, F), dtype=jnp.float32)
    bound = 1.0 / jnp.sqrt(jnp.float32(F))
    w = jax.random.uniform(kw, (F, O), jnp.float32, -bound, bound)
    b = jax.random.uniform(kb, (O,), jnp.float32, -bound, bound)

    y = time_distributed_linear(x, w, b, batch_first=True, compute_dtype=None)
    y = jax.block_until_ready(y)
    y_ref = (jnp.dot(x.reshape(-1, F), w,
                     precision=jax.lax.Precision.HIGHEST) + b).reshape(B, -1, O)
    assert y.shape == (B, T, O), y.shape
    assert jnp.allclose(y, y_ref, atol=2e-2, rtol=2e-2), \
        float(jnp.max(jnp.abs(y - y_ref)))

    # --- Check 1b: rank-2 input falls straight through to the linear. ---
    x1d = jax.random.normal(jax.random.PRNGKey(7), (5, F), dtype=jnp.float32)
    y1d = jax.block_until_ready(time_distributed_linear(x1d, w, b))
    y1d_ref = jnp.dot(x1d, w, precision=jax.lax.Precision.HIGHEST) + b
    assert y1d.shape == (5, O), y1d.shape
    assert jnp.allclose(y1d, y1d_ref, atol=3e-2, rtol=3e-2)

    # --- Check 2: bf16 compute, multi-row-tile resident path, ragged K/N. ---
    B2, T2, F2, O2 = 2, 64, 300, 192
    kx2, kw2, kb2 = jax.random.split(jax.random.PRNGKey(1), 3)
    x2 = jax.random.normal(kx2, (B2, T2, F2), dtype=jnp.float32)
    w2 = jax.random.normal(kw2, (F2, O2), dtype=jnp.float32) * 0.05
    b2 = jax.random.normal(kb2, (O2,), dtype=jnp.float32) * 0.05
    y2_ref = (jnp.dot(x2.reshape(-1, F2), w2,
                      precision=jax.lax.Precision.HIGHEST)
              + b2).reshape(B2, -1, O2)

    y2 = time_distributed_linear(x2, w2, b2, batch_first=True, tm=64)
    y2 = jax.block_until_ready(y2)
    assert y2.shape == (B2, T2, O2), y2.shape
    assert jnp.allclose(y2, y2_ref, atol=3e-2, rtol=3e-2), \
        float(jnp.max(jnp.abs(y2 - y2_ref)))

    # --- Check 3: force the streamed fallback (accumulator + epilogue path). ---
    y3 = time_distributed_linear(x2, w2, b2, batch_first=True,
                                 max_resident_bytes=0)
    y3 = jax.block_until_ready(y3)
    assert y3.shape == (B2, T2, O2), y3.shape
    assert jnp.allclose(y3, y2_ref, atol=3e-2, rtol=3e-2), \
        float(jnp.max(jnp.abs(y3 - y2_ref)))

    print("KERNEL_OK")
</pallas_src>

<mosaic_0001>
module attributes {stable_mosaic.version = 11 : i64} {
  func.func @_resident_kernel(%arg0: i32, %arg1: memref<16x32xf32, #tpu.memory_space<vmem>>, %arg2: memref<32x64xf32, #tpu.memory_space<vmem>>, %arg3: memref<1x64xf32, #tpu.memory_space<vmem>>, %arg4: memref<16x64xf32, #tpu.memory_space<vmem>>) attributes {dimension_semantics = [#tpu.dimension_semantics<parallel>], iteration_bounds = array<i64: 1>, scalar_prefetch = 0 : i64, scratch_operands = 0 : i64, tpu.core_type = #tpu.core_type<tc>, window_params = [{transform_indices = @transform_0, window_bounds = array<i64: 16, 32>}, {pipeline_mode = #tpu.pipeline_mode<synchronous>, transform_indices = @transform_1, window_bounds = array<i64: 32, 64>}, {pipeline_mode = #tpu.pipeline_mode<synchronous>, transform_indices = @transform_2, window_bounds = array<i64: 1, 64>}, {transform_indices = @transform_3, window_bounds = array<i64: 16, 64>}]} {
    %c0 = arith.constant 0 : index
    %c0_0 = arith.constant 0 : index
    %0 = vector.load %arg1[%c0, %c0_0] : memref<16x32xf32, #tpu.memory_space<vmem>>, vector<16x32xf32>
    %c0_1 = arith.constant 0 : index
    %c0_2 = arith.constant 0 : index
    %1 = vector.load %arg2[%c0_1, %c0_2] : memref<32x64xf32, #tpu.memory_space<vmem>>, vector<32x64xf32>
    %cst = arith.constant dense<0.000000e+00> : vector<16x64xf32>
    %2 = tpu.matmul %0, %1, %cst {dimension_numbers = #tpu.dot_dimension_numbers<[1], [0], [0], [1], [0, 0, 1, 1], [], []>} : vector<16x32xf32>, vector<32x64xf32>, vector<16x64xf32> -> vector<16x64xf32>
    %c0_3 = arith.constant 0 : index
    %c0_4 = arith.constant 0 : index
    %3 = vector.load %arg3[%c0_3, %c0_4] : memref<1x64xf32, #tpu.memory_space<vmem>>, vector<1x64xf32>
    %4 = vector.broadcast %3 : vector<1x64xf32> to vector<16x64xf32>
    %5 = arith.addf %2, %4 : vector<16x64xf32>
    %c0_5 = arith.constant 0 : index
    %c0_6 = arith.constant 0 : index
    %6 = vector.load %arg4[%c0_5, %c0_6] : memref<16x64xf32, #tpu.memory_space<vmem>>, vector<16x64xf32>
    tpu.vector_store %arg4[%c0_5, %c0_6], %5 {strides = array<i32>} : memref<16x64xf32, #tpu.memory_space<vmem>>, vector<16x64xf32>,
    return
  }
  func.func @transform_0(%arg0: i32) -> (i32, i32) {
    %c0_i32 = arith.constant 0 : i32
    %c0_i32_0 = arith.constant 0 : i32
    return %arg0, %c0_i32 : i32, i32
  }
  func.func @transform_1(%arg0: i32) -> (i32, i32) {
    %c0_i32 = arith.constant 0 : i32
    %c0_i32_0 = arith.constant 0 : i32
    %c0_i32_1 = arith.constant 0 : i32
    return %c0_i32, %c0_i32_0 : i32, i32
  }
  func.func @transform_2(%arg0: i32) -> (i32, i32) {
    %c0_i32 = arith.constant 0 : i32
    %c0_i32_0 = arith.constant 0 : i32
    %c0_i32_1 = arith.constant 0 : i32
    return %c0_i32, %c0_i32_0 : i32, i32
  }
  func.func @transform_3(%arg0: i32) -> (i32, i32) {
    %c0_i32 = arith.constant 0 : i32
    %c0_i32_0 = arith.constant 0 : i32
    return %arg0, %c0_i32 : i32, i32
  }
}

</mosaic_0001>

<llo_original>
// kernel: tpu_custom_call.1
$region0: #{tpu_custom_call.1}
  #allocation0 [shape = 'u32[]', space=smem, size = 0x4, offset = 0x4, fixed_abs, tag = 'smem constant byte address 0x4 - core index']
  #allocation1 [shape = 'u32[72,128]{1,0:T(1,128)}', space=vmem, size = 0x9000, scoped, tag = 'internal scratch']
  %s0 = inlined_call_operand.hbm [shape: f32[16,32], index: 0, kind: input, shape index: {}]
  %s1 = inlined_call_operand.hbm [shape: f32[32,64], index: 1, kind: input, shape index: {}]
  %s2 = inlined_call_operand.vmem [shape: f32[1,64], index: 2, kind: input, shape index: {}]
  %s3 = inlined_call_operand.hbm [shape: f32[16,64], index: 3, kind: output, shape index: {}]
  %s4 = sld [smem:[#allocation0]]
  $region30: #{tpu_custom_call.1} parent=0
    _
  %s6 = ssub.s32 1, %s4
  %s7 = scalar_select 0, %s6, %s4
  $region1: #{tpu_custom_call.1} parent=0
    #allocation2 [shape = 'u8[8192]{0}', space=vmem, size = 0x2000, scoped, tag = 'input window, operand 0, single buffered']
    #allocation3 [shape = 's32[1]{0}', space=sflag, size = 0x4, scoped, tag = 'scoped memory for tpu_custom_call.1']
    #allocation4 [shape = 's32[1]{0}', space=sflag, size = 0x4, scoped, tag = 'scoped memory for tpu_custom_call.1']
    #allocation5 [shape = 'u8[16384]{0}', space=vmem, size = 0x4000, scoped, tag = 'input window, operand 1, single buffered']
    #allocation6 [shape = 's32[1]{0}', space=sflag, size = 0x4, scoped, tag = 'scoped memory for tpu_custom_call.1']
    #allocation7 [shape = 'u8[8192]{0}', space=vmem, size = 0x2000, scoped, tag = 'output window, operand 0, single buffered']
    %8 = vsyncpa [#allocation3], 0
    %9 = vsyncpa [#allocation6], 0
    %10 = vsyncpa [#allocation4], 0
    // Predicated region
    $region2: #{tpu_custom_call.1} parent=1 // pred_check
      _
    $region3: #{tpu_custom_call.1} parent=1 // pred_check_branch
      %12 = sbr.rel (0) target = $region5
    $region4: #{tpu_custom_call.1} parent=1 // pred_region
      %14 = vsyncadd [#allocation3], 0
      %s15 = sshll.u32 %s0, 4
      %s16 = int_to_ptr.hbm [resolvable:$true] %s15
      %s17 = sshll.u32 [#allocation2], 4
      %s18 = int_to_ptr.vmem [resolvable:$true] %s17
      %23 = dma.hbm_to_vmem [thread:$0]  %s16, 256, %s18, [#allocation3], 128, 128, 8
    $region5: #{tpu_custom_call.1} parent=1 // pred_fallthru
      _
    // Predicated region
    $region6: #{tpu_custom_call.1} parent=1 // pred_check
      _
    $region7: #{tpu_custom_call.1} parent=1 // pred_check_branch
      %25 = sbr.rel (0) target = $region9
    $region8: #{tpu_custom_call.1} parent=1 // pred_region
      %27 = vsyncadd [#allocation6], 0
      %s28 = sshll.u32 %s1, 4
      %s29 = int_to_ptr.hbm [resolvable:$true] %s28
      %s30 = sshll.u32 [#allocation5], 4
      %s31 = int_to_ptr.vmem [resolvable:$true] %s30
      %36 = dma.hbm_to_vmem [thread:$0]  %s29, 512, %s31, [#allocation6], 128, 128, 8
    $region9: #{tpu_custom_call.1} parent=1 // pred_fallthru
      _
    // Predicated region
    $region10: #{tpu_custom_call.1} parent=1 // pred_check
      _
    $region11: #{tpu_custom_call.1} parent=1 // pred_check_branch
      %38 = sbr.rel (0) target = $region13
    $region12: #{tpu_custom_call.1} parent=1 // pred_region
      _
    $region13: #{tpu_custom_call.1} parent=1 // pred_fallthru
      _
    // Predicated region
    $region14: #{tpu_custom_call.1} parent=1 // pred_check
      _
    $region15: #{tpu_custom_call.1} parent=1 // pred_check_branch
      %40 = sbr.rel (0) target = $region17
    $region16: #{tpu_custom_call.1} parent=1 // pred_region
      %42 = dma.done [#allocation3], 256
    $region17: #{tpu_custom_call.1} parent=1 // pred_fallthru
      _
    // Predicated region
    $region18: #{tpu_custom_call.1} parent=1 // pred_check
      _
    $region19: #{tpu_custom_call.1} parent=1 // pred_check_branch
      %44 = sbr.rel (0) target = $region21
    $region20: #{tpu_custom_call.1} parent=1 // pred_region
      %46 = dma.done [#allocation6], 512
    $region21: #{tpu_custom_call.1} parent=1 // pred_fallthru
      _
    %v47 = vld [vmem:[#allocation2] sm:$0xff]
    %v48 = vld [vmem:[#allocation2 + $0x8] sm:$0xff]
    %v49 = vld [vmem:[#allocation5] sm:$0xff]
    %v50 = vld [vmem:[#allocation5 + $0x8] sm:$0xff]
    %v51 = vld [vmem:[#allocation5 + $0x10] sm:$0xff]
    %v52 = vld [vmem:[#allocation5 + $0x18] sm:$0xff]
    %v53 = vld [vmem:[%s2] sm:$0x1]
    %v55 = vperm.slane %v53, 0
    %vm57 = vcmask 261120
    %v59 = vsel %vm57, %v47, 0
    %v62 = vsel %vm57, %v48, 0
    %64 = vmatpush.msra.mxu0 0.0
    %65 = vmatpush.msra.mxu0 0.0
    %66 = vmatpush.msra.mxu0 0.0
    %67 = vmatpush.msra.mxu0 0.0
    %68 = vmatpush.msra.mxu0 0.0
    %69 = vmatpush.msra.mxu0 0.0
    %70 = vmatpush.msra.mxu0 0.0
    %71 = vmatpush.msra.mxu0 0.0
    %72 = vmatpush.msra.mxu0 0.0
    %73 = vmatpush.msra.mxu0 0.0
    %74 = vmatpush.msra.mxu0 0.0
    %75 = vmatpush.msra.mxu0 0.0
    %76 = vmatpush.msra.mxu0 %v52
    %77 = vmatpush.msra.mxu0 %v51
    %78 = vmatpush.msra.mxu0 %v50
    %79 = vmatpush.msra.mxu0 %v49
    %80 = vmatmul.f32.gmra.mxu0 %v59
    %v81 = vpop.f32.mrf.mxu0
    %v82 = vadd.f32 %v55, %v81
    %83 = vmatmul.f32.gmra.mxu0 %v62
    %v84 = vpop.f32.mrf.mxu0
    %v85 = vadd.f32 %v55, %v84
    %86 = vdwg.mxu0
    %vm87 = vcmask 523264
    %88 = vst.msk [vmem:[#allocation7] sm:$0xff] %vm87, %v82
    %89 = vst.msk [vmem:[#allocation7 + $0x8] sm:$0xff] %vm87, %v85
    // Predicated region
    $region22: #{tpu_custom_call.1} parent=1 // pred_check
      _
    $region23: #{tpu_custom_call.1} parent=1 // pred_check_branch
      %91 = sbr.rel (0) target = $region25
    $region24: #{tpu_custom_call.1} parent=1 // pred_region
      %93 = vsyncadd [#allocation4], 0
      %s94 = sshll.u32 [#allocation7], 4
      %s95 = int_to_ptr.vmem [resolvable:$true] %s94
      %s96 = sshll.u32 %s3, 4
      %s97 = int_to_ptr.hbm [resolvable:$true] %s96
      %102 = dma.vmem_to_hbm [thread:$0]  %s95, 256, %s97, [#allocation4], 128, 128, 8
    $region25: #{tpu_custom_call.1} parent=1 // pred_fallthru
      _
    // Predicated region
    $region26: #{tpu_custom_call.1} parent=1 // pred_check
      _
    $region27: #{tpu_custom_call.1} parent=1 // pred_check_branch
      %104 = sbr.rel (0) target = $region29
    $region28: #{tpu_custom_call.1} parent=1 // pred_region
      %106 = dma.done [#allocation4], 256
    $region29: #{tpu_custom_call.1} parent=1 // pred_fallthru
      _
    %107 = vsyncpa [#allocation3], 1
    %108 = vsyncpa [#allocation6], 1
    %109 = vsyncpa [#allocation4], 1

</llo_original>
